<compile_context>
chip_gen: v7x
topology: tpu7x:2x2x1
jax: 0.10.0
libtpu: 0.0.40
codegen_flags: <defaults>
</compile_context>

<pallas_src>
import math

import numpy as np
import jax
import jax.numpy as jnp
from jax.experimental import pallas as pl
from jax.experimental.pallas import tpu as pltpu


def _linear_bn_relu_kernel(x_ref, w_ref, shift_ref, o_ref):
    x = x_ref[...]
    w = w_ref[...]
    if x.dtype != w.dtype:
        # In-kernel cast to the MXU dtype (bf16 recommended): rides the idle VPU slot,
        # avoids an extra XLA cast pass over x in HBM.
        x = x.astype(w.dtype)
    y = jnp.dot(x, w, preferred_element_type=jnp.float32)   # MXU, f32 accumulation
    y = y + shift_ref[...]                                   # f32 BN shift epilogue
    o_ref[...] = jnp.maximum(y, 0.0).astype(o_ref.dtype)    # ReLU + output cast


def conv1d_forward(x, weight_t, scale, shift, *, tile_n=8192,
                   mxu_dtype=jnp.bfloat16, out_dtype=jnp.float32,
                   vmem_budget_bytes=24 * 1024 * 1024):
    """Fused Linear(no bias) + BatchNorm1d(eval) + ReLU.

    x:         (N, C_in)
    weight_t:  (C_in, C_out)   transposed nn.Linear weight
    scale:     (1, C_out)      gamma / sqrt(running_var + eps)
    shift:     (1, C_out)      beta - running_mean * scale
    tile_n:    original rows per grid step (main tuning knob; sweep 4096..16384).
    mxu_dtype: matmul operand dtype (bf16 recommended; accumulation is always f32).
    out_dtype: output dtype (bf16 recommended when downstream tolerates it — the
               output is the dominant HBM stream for these tiny channel counts).
    """
    N, C_in = x.shape
    C_out = weight_t.shape[1]

    # ---- Fold BN scale into the weight (kernel only sees folded W + shift) ----
    w_folded = (jnp.asarray(weight_t, jnp.float32)
                * jnp.asarray(scale, jnp.float32).reshape(1, C_out))
    shift_row = jnp.asarray(shift, jnp.float32).reshape(1, C_out)

    # ---- Channel padding so packed tiles are exactly lane-dense (128-lane) ----
    if C_in <= 128:
        cin_pad = pl.next_power_of_2(C_in)            # divisor of 128
    else:
        cin_pad = pl.cdiv(C_in, 128) * 128
    pack = max(1, 128 // cin_pad)                     # rows packed per packed-row
    lane_quot = 128 // math.gcd(pack, 128)
    cout_pad = pl.cdiv(C_out, lane_quot) * lane_quot  # pack*cout_pad % 128 == 0
    cin_p, cout_p = pack * cin_pad, pack * cout_pad

    if (cin_pad, cout_pad) != (C_in, C_out):
        w_folded = jnp.pad(w_folded, ((0, cin_pad - C_in), (0, cout_pad - C_out)))
        shift_row = jnp.pad(shift_row, ((0, 0), (0, cout_pad - C_out)))

    # ---- Row packing: pad N only to a multiple of `pack` (<= pack-1 rows) ----
    # The ragged last grid block is handled by Pallas: OOB rows hold garbage but are
    # never written past the array bound, and the output is sliced back to N below.
    n_ceil = pl.cdiv(N, pack) * pack
    packed_rows = n_ceil // pack
    if n_ceil != N or cin_pad != C_in:
        x = jnp.pad(x, ((0, n_ceil - N), (0, cin_pad - C_in)))
    x_p = x.reshape(packed_rows, cin_p)               # free row-major reshape, NO cast

    # Weight / shift are tiny and grid-constant; cast the weight once in the wrapper.
    w_p = jnp.kron(jnp.eye(pack, dtype=jnp.float32), w_folded).astype(mxu_dtype)
    shift_p = jnp.tile(shift_row, (1, pack))          # (1, cout_p), f32

    # ---- Tile sizing ----
    x_itemsize = np.dtype(x_p.dtype).itemsize
    w_itemsize = np.dtype(mxu_dtype).itemsize
    out_itemsize = np.dtype(out_dtype).itemsize
    sublane = 16 if x_itemsize == 2 else 8            # bf16 packs 16 rows / vreg
    tile_rows = max(sublane, (int(tile_n) // pack // sublane) * sublane)

    # VMEM budget: 2x(x_tile + out_tile) double buffers + weight/shift buffers.
    per_row = 2 * (cin_p * x_itemsize + cout_p * out_itemsize)
    fixed = 2 * (cin_p * cout_p * w_itemsize + cout_p * 4)
    max_rows = max(sublane,
                   ((vmem_budget_bytes - fixed) // per_row) // sublane * sublane)
    tile_rows = min(tile_rows, max_rows)

    # Keep >= 2 grid steps when possible so ("parallel",) can use both v7x TCs.
    if tile_rows >= packed_rows and packed_rows >= 2 * sublane:
        tile_rows = pl.cdiv(pl.cdiv(packed_rows, 2), sublane) * sublane
    tile_rows = min(tile_rows, pl.cdiv(packed_rows, sublane) * sublane)
    tile_rows = max(tile_rows, sublane)
    grid = (pl.cdiv(packed_rows, tile_rows),)

    cost = pl.CostEstimate(
        flops=2 * N * C_in * C_out,
        transcendentals=0,
        bytes_accessed=(x_p.size * x_itemsize
                        + cin_p * cout_p * w_itemsize
                        + cout_p * 4
                        + packed_rows * cout_p * out_itemsize),
    )

    out_p = pl.pallas_call(
        _linear_bn_relu_kernel,
        out_shape=jax.ShapeDtypeStruct((packed_rows, cout_p), out_dtype),
        grid_spec=pltpu.PrefetchScalarGridSpec(
            num_scalar_prefetch=0,
            grid=grid,
            in_specs=[
                pl.BlockSpec((tile_rows, cin_p), lambda i: (i, 0)),   # packed x tile
                pl.BlockSpec((cin_p, cout_p), lambda i: (0, 0)),      # folded weight
                pl.BlockSpec((1, cout_p), lambda i: (0, 0)),          # BN shift
            ],
            out_specs=pl.BlockSpec((tile_rows, cout_p), lambda i: (i, 0)),
        ),
        compiler_params=pltpu.CompilerParams(
            dimension_semantics=("parallel",),        # megacore-shardable grid axis
            vmem_limit_bytes=32 * 1024 * 1024,        # safe on v5e/v6e/v7x
        ),
        cost_estimate=cost,
    )(x_p, w_p, shift_p)

    out = out_p.reshape(n_ceil, cout_pad)             # free row-major reshape
    if n_ceil != N or cout_pad != C_out:
        out = out[:N, :C_out]
    return out


def make_params(key, in_channels, out_channels, eps=0.001):
    """Deterministic synthetic parameters (shapes match nn.Linear + nn.BatchNorm1d)."""
    kw, = jax.random.split(key, 1)
    # nn.Linear(in, out, bias=False): weight shape (out, in). Store transposed.
    w = jax.random.normal(kw, (out_channels, in_channels), jnp.float32) * 0.1
    weight_t = w.T                                              # (C_in, C_out)

    gamma = 1.0 + 0.05 * jnp.arange(out_channels, dtype=jnp.float32)
    beta = 0.01 * jnp.arange(out_channels, dtype=jnp.float32)
    running_mean = 0.02 * jnp.arange(out_channels, dtype=jnp.float32)
    running_var = 1.0 + 0.03 * jnp.arange(out_channels, dtype=jnp.float32)

    scale = gamma / jnp.sqrt(running_var + eps)                 # (C_out,)
    shift = beta - running_mean * scale                         # (C_out,)
    return weight_t, scale.reshape(1, -1), shift.reshape(1, -1)


def reference_forward(x, weight_t, scale, shift):
    # Pure-JAX reference of the module's eval-mode semantics.
    return jnp.maximum(jnp.dot(x, weight_t) * scale + shift, 0.0)


if __name__ == "__main__":
    key = jax.random.PRNGKey(0)
    kx1, kx2, kp = jax.random.split(key, 3)

    C_in, C_out = 16, 32
    weight_t, scale, shift = make_params(kp, C_in, C_out)

    # --- Small case (module-scale shapes), exact f32 MXU path: tight tolerance ---
    N1 = 64
    x1 = jax.random.normal(kx1, (N1, C_in), jnp.float32)
    out1 = jax.block_until_ready(
        conv1d_forward(x1, weight_t, scale, shift, mxu_dtype=jnp.float32))
    ref1 = reference_forward(x1, weight_t, scale, shift)
    assert out1.shape == (N1, C_out)
    assert jnp.allclose(out1, ref1, atol=1e-4, rtol=1e-4), "f32 small-case mismatch"

    # --- Larger ragged N: pack-only padding + ragged 2-step parallel grid,
    #     default bf16 MXU operands with f32 accumulation/epilogue ---
    N2 = 4100
    x2 = jax.random.normal(kx2, (N2, C_in), jnp.float32)
    out2 = jax.block_until_ready(conv1d_forward(x2, weight_t, scale, shift))
    ref2 = reference_forward(x2, weight_t, scale, shift)
    assert out2.shape == (N2, C_out)
    assert jnp.allclose(out2, ref2, atol=5e-2, rtol=5e-2), "bf16-MXU ragged mismatch"

    # --- Recommended bf16-output path (halves the dominant HBM stream) ---
    out2_bf16 = jax.block_until_ready(
        conv1d_forward(x2, weight_t, scale, shift, out_dtype=jnp.bfloat16))
    assert out2_bf16.dtype == jnp.bfloat16
    assert jnp.allclose(out2_bf16.astype(jnp.float32), ref2,
                        atol=1e-1, rtol=1e-1), "bf16-output path mismatch"

    print("KERNEL_OK")
</pallas_src>

<mosaic_0001>
module attributes {stable_mosaic.version = 11 : i64} {
  func.func @_linear_bn_relu_kernel(%arg0: i32, %arg1: memref<8x128xf32, #tpu.memory_space<vmem>>, %arg2: memref<128x256xf32, #tpu.memory_space<vmem>>, %arg3: memref<1x256xf32, #tpu.memory_space<vmem>>, %arg4: memref<8x256xf32, #tpu.memory_space<vmem>>) attributes {dimension_semantics = [#tpu.dimension_semantics<parallel>], iteration_bounds = array<i64: 1>, scalar_prefetch = 0 : i64, scratch_operands = 0 : i64, tpu.core_type = #tpu.core_type<tc>, window_params = [{transform_indices = @transform_0, window_bounds = array<i64: 8, 128>}, {pipeline_mode = #tpu.pipeline_mode<synchronous>, transform_indices = @transform_1, window_bounds = array<i64: 128, 256>}, {pipeline_mode = #tpu.pipeline_mode<synchronous>, transform_indices = @transform_2, window_bounds = array<i64: 1, 256>}, {transform_indices = @transform_3, window_bounds = array<i64: 8, 256>}]} {
    %c0 = arith.constant 0 : index
    %c0_0 = arith.constant 0 : index
    %0 = vector.load %arg1[%c0, %c0_0] : memref<8x128xf32, #tpu.memory_space<vmem>>, vector<8x128xf32>
    %c0_1 = arith.constant 0 : index
    %c0_2 = arith.constant 0 : index
    %1 = vector.load %arg2[%c0_1, %c0_2] : memref<128x256xf32, #tpu.memory_space<vmem>>, vector<128x256xf32>
    %cst = arith.constant dense<0.000000e+00> : vector<8x256xf32>
    %2 = tpu.matmul %0, %1, %cst {dimension_numbers = #tpu.dot_dimension_numbers<[1], [0], [0], [1], [0, 0, 1, 1], [], []>} : vector<8x128xf32>, vector<128x256xf32>, vector<8x256xf32> -> vector<8x256xf32>
    %c0_3 = arith.constant 0 : index
    %c0_4 = arith.constant 0 : index
    %3 = vector.load %arg3[%c0_3, %c0_4] : memref<1x256xf32, #tpu.memory_space<vmem>>, vector<1x256xf32>
    %4 = vector.broadcast %3 : vector<1x256xf32> to vector<8x256xf32>
    %5 = arith.addf %2, %4 : vector<8x256xf32>
    %cst_5 = arith.constant 0.000000e+00 : f32
    %6 = vector.broadcast %cst_5 : f32 to vector<8x256xf32>
    %7 = arith.maximumf %5, %6 : vector<8x256xf32>
    %c0_6 = arith.constant 0 : index
    %c0_7 = arith.constant 0 : index
    %8 = vector.load %arg4[%c0_6, %c0_7] : memref<8x256xf32, #tpu.memory_space<vmem>>, vector<8x256xf32>
    tpu.vector_store %arg4[%c0_6, %c0_7], %7 {strides = array<i32>} : memref<8x256xf32, #tpu.memory_space<vmem>>, vector<8x256xf32>,
    return
  }
  func.func @transform_0(%arg0: i32) -> (i32, i32) {
    %c0_i32 = arith.constant 0 : i32
    %c0_i32_0 = arith.constant 0 : i32
    return %arg0, %c0_i32 : i32, i32
  }
  func.func @transform_1(%arg0: i32) -> (i32, i32) {
    %c0_i32 = arith.constant 0 : i32
    %c0_i32_0 = arith.constant 0 : i32
    %c0_i32_1 = arith.constant 0 : i32
    return %c0_i32, %c0_i32_0 : i32, i32
  }
  func.func @transform_2(%arg0: i32) -> (i32, i32) {
    %c0_i32 = arith.constant 0 : i32
    %c0_i32_0 = arith.constant 0 : i32
    %c0_i32_1 = arith.constant 0 : i32
    return %c0_i32, %c0_i32_0 : i32, i32
  }
  func.func @transform_3(%arg0: i32) -> (i32, i32) {
    %c0_i32 = arith.constant 0 : i32
    %c0_i32_0 = arith.constant 0 : i32
    return %arg0, %c0_i32 : i32, i32
  }
}

</mosaic_0001>

<llo_original>
// kernel: tpu_custom_call.1
$region0: #{tpu_custom_call.1}
  #allocation0 [shape = 'u32[]', space=smem, size = 0x4, offset = 0x4, fixed_abs, tag = 'smem constant byte address 0x4 - core index']
  #allocation1 [shape = 'u32[144,128]{1,0:T(1,128)}', space=vmem, size = 0x12000, scoped, tag = 'internal scratch']
  %s0 = inlined_call_operand.hbm [shape: f32[8,128], index: 0, kind: input, shape index: {}]
  %s1 = inlined_call_operand.hbm [shape: f32[128,256], index: 1, kind: input, shape index: {}]
  %s2 = inlined_call_operand.vmem [shape: f32[1,256], index: 2, kind: input, shape index: {}]
  %s3 = inlined_call_operand.hbm [shape: f32[8,256], index: 3, kind: output, shape index: {}]
  %s4 = sld [smem:[#allocation0]]
  $region30: #{tpu_custom_call.1} parent=0
    _
  %s6 = ssub.s32 1, %s4
  %s7 = scalar_select 0, %s6, %s4
  $region1: #{tpu_custom_call.1} parent=0
    #allocation2 [shape = 'u8[4096]{0}', space=vmem, size = 0x1000, scoped, tag = 'input window, operand 0, single buffered']
    #allocation3 [shape = 's32[1]{0}', space=sflag, size = 0x4, scoped, tag = 'scoped memory for tpu_custom_call.1']
    #allocation4 [shape = 's32[1]{0}', space=sflag, size = 0x4, scoped, tag = 'scoped memory for tpu_custom_call.1']
    #allocation5 [shape = 'u8[131072]{0}', space=vmem, size = 0x20000, scoped, tag = 'input window, operand 1, single buffered']
    #allocation6 [shape = 's32[1]{0}', space=sflag, size = 0x4, scoped, tag = 'scoped memory for tpu_custom_call.1']
    #allocation7 [shape = 'u8[8192]{0}', space=vmem, size = 0x2000, scoped, tag = 'output window, operand 0, single buffered']
    %8 = vsyncpa [#allocation3], 0
    %9 = vsyncpa [#allocation6], 0
    %10 = vsyncpa [#allocation4], 0
    // Predicated region
    $region2: #{tpu_custom_call.1} parent=1 // pred_check
      _
    $region3: #{tpu_custom_call.1} parent=1 // pred_check_branch
      %12 = sbr.rel (0) target = $region5
    $region4: #{tpu_custom_call.1} parent=1 // pred_region
      %s14 = ssub.s32 128, 128
      %15 = vsyncadd [#allocation3], %s14
      %s17 = sshll.u32 [#allocation2], 4
      %s18 = int_to_ptr.vmem [resolvable:$true] %s17
      %20 = dma.hbm_to_vmem [thread:$0]  %s0, 128, %s18, [#allocation3]
    $region5: #{tpu_custom_call.1} parent=1 // pred_fallthru
      _
    // Predicated region
    $region6: #{tpu_custom_call.1} parent=1 // pred_check
      _
    $region7: #{tpu_custom_call.1} parent=1 // pred_check_branch
      %22 = sbr.rel (0) target = $region9
    $region8: #{tpu_custom_call.1} parent=1 // pred_region
      %s24 = ssub.s32 4096, 4096
      %25 = vsyncadd [#allocation6], %s24
      %s26 = sshll.u32 [#allocation5], 4
      %s27 = int_to_ptr.vmem [resolvable:$true] %s26
      %32 = dma.hbm_to_vmem [thread:$0]  %s1, 4096, %s27, [#allocation6], 256, 256, 16
    $region9: #{tpu_custom_call.1} parent=1 // pred_fallthru
      _
    // Predicated region
    $region10: #{tpu_custom_call.1} parent=1 // pred_check
      _
    $region11: #{tpu_custom_call.1} parent=1 // pred_check_branch
      %34 = sbr.rel (0) target = $region13
    $region12: #{tpu_custom_call.1} parent=1 // pred_region
      _
    $region13: #{tpu_custom_call.1} parent=1 // pred_fallthru
      _
    // Predicated region
    $region14: #{tpu_custom_call.1} parent=1 // pred_check
      _
    $region15: #{tpu_custom_call.1} parent=1 // pred_check_branch
      %36 = sbr.rel (0) target = $region17
    $region16: #{tpu_custom_call.1} parent=1 // pred_region
      %37 = dma.done [#allocation3], 128
    $region17: #{tpu_custom_call.1} parent=1 // pred_fallthru
      _
    // Predicated region
    $region18: #{tpu_custom_call.1} parent=1 // pred_check
      _
    $region19: #{tpu_custom_call.1} parent=1 // pred_check_branch
      %39 = sbr.rel (0) target = $region21
    $region20: #{tpu_custom_call.1} parent=1 // pred_region
      %40 = dma.done [#allocation6], 4096
    $region21: #{tpu_custom_call.1} parent=1 // pred_fallthru
      _
    %v41 = vld [vmem:[#allocation2] sm:$0xff]
    %v42 = vld [vmem:[#allocation5] sm:$0xff]
    %v43 = vld [vmem:[#allocation5 + $0x8] sm:$0xff]
    %v44 = vld [vmem:[#allocation5 + $0x10] sm:$0xff]
    %v45 = vld [vmem:[#allocation5 + $0x18] sm:$0xff]
    %v46 = vld [vmem:[#allocation5 + $0x20] sm:$0xff]
    %v47 = vld [vmem:[#allocation5 + $0x28] sm:$0xff]
    %v48 = vld [vmem:[#allocation5 + $0x30] sm:$0xff]
    %v49 = vld [vmem:[#allocation5 + $0x38] sm:$0xff]
    %v50 = vld [vmem:[#allocation5 + $0x40] sm:$0xff]
    %v51 = vld [vmem:[#allocation5 + $0x48] sm:$0xff]
    %v52 = vld [vmem:[#allocation5 + $0x50] sm:$0xff]
    %v53 = vld [vmem:[#allocation5 + $0x58] sm:$0xff]
    %v54 = vld [vmem:[#allocation5 + $0x60] sm:$0xff]
    %v55 = vld [vmem:[#allocation5 + $0x68] sm:$0xff]
    %v56 = vld [vmem:[#allocation5 + $0x70] sm:$0xff]
    %v57 = vld [vmem:[#allocation5 + $0x78] sm:$0xff]
    %v58 = vld [vmem:[#allocation5 + $0x80] sm:$0xff]
    %v59 = vld [vmem:[#allocation5 + $0x88] sm:$0xff]
    %v60 = vld [vmem:[#allocation5 + $0x90] sm:$0xff]
    %v61 = vld [vmem:[#allocation5 + $0x98] sm:$0xff]
    %v62 = vld [vmem:[#allocation5 + $0xa0] sm:$0xff]
    %v63 = vld [vmem:[#allocation5 + $0xa8] sm:$0xff]
    %v64 = vld [vmem:[#allocation5 + $0xb0] sm:$0xff]
    %v65 = vld [vmem:[#allocation5 + $0xb8] sm:$0xff]
    %v66 = vld [vmem:[#allocation5 + $0xc0] sm:$0xff]
    %v67 = vld [vmem:[#allocation5 + $0xc8] sm:$0xff]
    %v68 = vld [vmem:[#allocation5 + $0xd0] sm:$0xff]
    %v69 = vld [vmem:[#allocation5 + $0xd8] sm:$0xff]
    %v70 = vld [vmem:[#allocation5 + $0xe0] sm:$0xff]
    %v71 = vld [vmem:[#allocation5 + $0xe8] sm:$0xff]
    %v72 = vld [vmem:[#allocation5 + $0xf0] sm:$0xff]
    %v73 = vld [vmem:[#allocation5 + $0xf8] sm:$0xff]
    %v74 = vld [vmem:[%s2] sm:$0x3]
    %v76 = vlaneseq
    %v77 = vshrl.u32 %v76, 7
    %v78 = vsub.s32 0, %v77
    %v79 = vrot.slane %v74, %v78
    %v80 = vlaneseq
    %v81 = vshrl.u32 %v80, 7
    %v82 = vsub.s32 1, %v81
    %v83 = vrot.slane %v74, %v82
    %86 = vmatprep.subr.mxu0 %v43
    %87 = vmatpush1.msra.mxu0 %v42
    %88 = vmatprep.subr.mxu0 %v45
    %89 = vmatpush1.msra.mxu0 %v44
    %90 = vmatprep.subr.mxu0 %v47
    %91 = vmatpush1.msra.mxu0 %v46
    %92 = vmatprep.subr.mxu0 %v49
    %93 = vmatpush1.msra.mxu0 %v48
    %94 = vmatprep.subr.mxu0 %v51
    %95 = vmatpush1.msra.mxu0 %v50
    %96 = vmatprep.subr.mxu0 %v53
    %97 = vmatpush1.msra.mxu0 %v52
    %98 = vmatprep.subr.mxu0 %v55
    %99 = vmatpush1.msra.mxu0 %v54
    %100 = vmatprep.subr.mxu0 %v57
    %101 = vmatpush1.msra.mxu0 %v56
    %102 = vmatprep.subr.mxu0 %v59
    %103 = vmatpush1.msra.mxu0 %v58
    %104 = vmatprep.subr.mxu0 %v61
    %105 = vmatpush1.msra.mxu0 %v60
    %106 = vmatprep.subr.mxu0 %v63
    %107 = vmatpush1.msra.mxu0 %v62
    %108 = vmatprep.subr.mxu0 %v65
    %109 = vmatpush1.msra.mxu0 %v64
    %110 = vmatprep.subr.mxu0 %v67
    %111 = vmatpush1.msra.mxu0 %v66
    %112 = vmatprep.subr.mxu0 %v69
    %113 = vmatpush1.msra.mxu0 %v68
    %114 = vmatprep.subr.mxu0 %v71
    %115 = vmatpush1.msra.mxu0 %v70
    %116 = vmatprep.subr.mxu0 %v73
    %117 = vmatpush1.msra.mxu0 %v72
    %118 = vmatprep.subr.mxu0 0.0
    %119 = vmatpush1.msra.mxu0 0.0
    %120 = vmatprep.subr.mxu0 0.0
    %121 = vmatpush1.msra.mxu0 0.0
    %122 = vmatprep.subr.mxu0 0.0
    %123 = vmatpush1.msra.mxu0 0.0
    %124 = vmatprep.subr.mxu0 0.0
    %125 = vmatpush1.msra.mxu0 0.0
    %126 = vmatprep.subr.mxu0 0.0
    %127 = vmatpush1.msra.mxu0 0.0
    %128 = vmatprep.subr.mxu0 0.0
    %129 = vmatpush1.msra.mxu0 0.0
    %130 = vmatprep.subr.mxu0 0.0
    %131 = vmatpush1.msra.mxu0 0.0
    %132 = vmatprep.subr.mxu0 0.0
    %133 = vmatpush1.msra.mxu0 0.0
    %134 = vmatprep.subr.mxu0 0.0
    %135 = vmatpush1.msra.mxu0 0.0
    %136 = vmatprep.subr.mxu0 0.0
    %137 = vmatpush1.msra.mxu0 0.0
    %138 = vmatprep.subr.mxu0 0.0
    %139 = vmatpush1.msra.mxu0 0.0
    %140 = vmatprep.subr.mxu0 0.0
    %141 = vmatpush1.msra.mxu0 0.0
    %142 = vmatprep.subr.mxu0 0.0
    %143 = vmatpush1.msra.mxu0 0.0
    %144 = vmatprep.subr.mxu0 0.0
    %145 = vmatpush1.msra.mxu0 0.0
    %146 = vmatprep.subr.mxu0 0.0
    %147 = vmatpush1.msra.mxu0 0.0
    %148 = vmatprep.subr.mxu0 0.0
    %149 = vmatpush1.msra.mxu0 0.0
    %150 = vmatprep.mubr.f32.mxu0 0.0
    %151 = vmatmul.mubr.f32.gmra.mrb[0].mxu0 %v41
    %v152 = vpop.f32.mrb[0].mxu0
    %v153 = vadd.f32 %v79, %v152
    %v154 = vpop.f32.mrb[0].mxu0
    %v155 = vadd.f32 %v83, %v154
    %156 = vdwg.mxu0
    %v157 = vmax.f32 %v153, 0.0
    %v158 = vmax.f32 %v155, 0.0
    %159 = vst [vmem:[#allocation7] sm:$0xff] %v157
    %160 = vst [vmem:[#allocation7 + $0x8] sm:$0xff] %v158
    // Predicated region
    $region22: #{tpu_custom_call.1} parent=1 // pred_check
      _
    $region23: #{tpu_custom_call.1} parent=1 // pred_check_branch
      %162 = sbr.rel (0) target = $region25
    $region24: #{tpu_custom_call.1} parent=1 // pred_region
      %s164 = ssub.s32 256, 256
      %165 = vsyncadd [#allocation4], %s164
      %s167 = sshll.u32 [#allocation7], 4
      %s168 = int_to_ptr.vmem [resolvable:$true] %s167
      %170 = dma.vmem_to_hbm [thread:$0]  %s168, 256, %s3, [#allocation4]
    $region25: #{tpu_custom_call.1} parent=1 // pred_fallthru
      _
    // Predicated region
    $region26: #{tpu_custom_call.1} parent=1 // pred_check
      _
    $region27: #{tpu_custom_call.1} parent=1 // pred_check_branch
      %172 = sbr.rel (0) target = $region29
    $region28: #{tpu_custom_call.1} parent=1 // pred_region
      %173 = dma.done [#allocation4], 256
    $region29: #{tpu_custom_call.1} parent=1 // pred_fallthru
      _
    %174 = vsyncpa [#allocation3], 1
    %175 = vsyncpa [#allocation6], 1
    %176 = vsyncpa [#allocation4], 1

</llo_original>
